<compile_context>
chip_gen: v5e
topology: v5e:2x2
jax: 0.10.0
libtpu: 0.0.40
codegen_flags: <defaults>
</compile_context>

<pallas_src>
import functools
import math

import jax
import jax.numpy as jnp
from jax import lax
from jax.experimental import pallas as pl
from jax.experimental.pallas import tpu as pltpu


def _round_up(a, b):
    return (a + b - 1) // b * b


# ----------------------------------------------------------------------------
# Kernel 1: Gabor weight synthesis, emitted directly in the fused-GEMM layout.
# Output: (OC, KH*KW*IC) with [oc, t*IC + ic] = g(params[oc, ic], grid[t]),
# t = dy*KW + dx — exactly the lhs layout the conv kernel contracts against.
# ----------------------------------------------------------------------------
def gabor_weight_kernel(freq_ref, theta_ref, sigma_ref, psi_ref, x_ref, y_ref, w_ref):
    delta = 0.001
    freq = freq_ref[...]      # (OC, K)  K = KH*KW*IC
    theta = theta_ref[...]
    sigma = sigma_ref[...]
    psi = psi_ref[...]
    x = x_ref[...]            # (1, K) tap x-coordinate, broadcast over OC
    y = y_ref[...]

    st = jnp.sin(theta)       # one sin/cos pair shared by rotx/roty
    ct = jnp.cos(theta)
    rotx = x * ct + y * st
    roty = -x * st + y * ct
    g = jnp.exp(-0.5 * ((rotx ** 2 + roty ** 2) / (sigma + delta) ** 2))
    g = g * jnp.cos(freq * rotx + psi)
    g = g / (2.0 * math.pi * sigma ** 2)
    w_ref[...] = g


def compute_gabor_weights(freq, theta, sigma, psi, kh, kw):
    """Returns (OC, KH*KW*IC) float32 Gabor filter bank (fused-GEMM layout)."""
    oc, ic = freq.shape
    k_dim = kh * kw * ic
    x0 = math.ceil(kh / 2)
    y0 = math.ceil(kw / 2)
    # torch.meshgrid([linspace(-x0+1, x0, kh), linspace(-y0+1, y0, kw)]) ('ij'):
    # first linspace (kh points) -> self.y (varies along dim 0), second -> self.x.
    a = jnp.linspace(-x0 + 1, x0 + 0, kh, dtype=jnp.float32)
    b = jnp.linspace(-y0 + 1, y0 + 0, kw, dtype=jnp.float32)
    ygrid, xgrid = jnp.meshgrid(a, b, indexing="ij")        # y[i,j]=a[i], x[i,j]=b[j]

    # Host-side prep of the tiny broadcast operands (t-major, ic-minor lanes):
    #   params[oc, t*IC+ic] = param[oc, ic]   (jnp.tile along lanes)
    #   grid  [0,  t*IC+ic] = grid_flat[t]    (jnp.repeat by IC)
    def tile_k(p):
        return jnp.tile(p.astype(jnp.float32), (1, kh * kw))
    xk = jnp.repeat(xgrid.reshape(-1), ic)[None, :]
    yk = jnp.repeat(ygrid.reshape(-1), ic)[None, :]

    vmem = pl.BlockSpec(memory_space=pltpu.MemorySpace.VMEM)
    return pl.pallas_call(
        gabor_weight_kernel,
        out_shape=jax.ShapeDtypeStruct((oc, k_dim), jnp.float32),
        in_specs=[vmem] * 6,
        out_specs=vmem,
    )(tile_k(freq), tile_k(theta), tile_k(sigma), tile_k(psi), xk, yk)


# ----------------------------------------------------------------------------
# Kernel 2: implicit-GEMM conv — ONE fused MXU matmul per flat-spatial tile.
# ----------------------------------------------------------------------------
def _conv_fused_kernel(xc_ref, xh_ref, w_ref, o_ref, *, kh, kw, width, tm):
    # xc_ref: (1, IC, TM)        bf16 current flat-spatial tile
    # xh_ref: (1, IC, TH)        bf16 halo columns immediately after the tile
    # w_ref:  (OC, KH*KW*IC)     bf16 fused Gabor filter bank (resident)
    # o_ref:  (1, OC, TM)        f32 lane-dense output tile (TM % 128 == 0)
    x2 = jnp.concatenate([xc_ref[0], xh_ref[0]], axis=-1)     # (IC, TM+TH)

    # Build the stacked im2col operand: each shifted slab is written exactly
    # once into its contraction rows (t-major, ic-minor) — no per-tap matmuls.
    slabs = []
    for t in range(kh * kw):                                  # static tap loop
        dy, dx = divmod(t, kw)
        off = dy * width + dx                                 # static flat shift
        slabs.append(x2[:, off:off + tm])                     # (IC, TM)
    a = jnp.concatenate(slabs, axis=0)                        # (K, TM) bf16

    # Single MXU matmul with K = KH*KW*IC, f32 accumulation.
    o_ref[0] = jnp.dot(w_ref[...], a, preferred_element_type=jnp.float32)


def conv2d_pallas(x, w_fused, kh, kw, *, tm_target=1024):
    """x: (N, IC, H, W) f32 NCHW; w_fused: (OC, KH*KW*IC) f32.
    Conv2d stride=1, padding=0, dilation=1, groups=1, no bias. Returns NCHW f32."""
    n, ic, h, width = x.shape
    oc, k_dim = w_fused.shape
    assert k_dim == kh * kw * ic
    oh, ow = h - kh + 1, width - kw + 1

    m_img = oh * width                            # per-image flat output length
    max_off = (kh - 1) * width + (kw - 1)         # largest tap shift
    th = _round_up(max(max_off, 1), 128)          # halo width (lane-aligned)
    tm = _round_up(min(m_img, tm_target), th)     # tile: multiple of TH (and 128)
    ntiles = pl.cdiv(m_img, tm)
    # Keep both v7x TensorCores busy when batch == 1: split the spatial axis.
    if n * ntiles < 2 and m_img > th:
        tm2 = _round_up(pl.cdiv(m_img, 2), th)
        if tm2 < tm:
            tm = tm2
            ntiles = pl.cdiv(m_img, tm)
    r = tm // th
    mpad = ntiles * tm
    lx = mpad + th                                # minimal halo padding only

    # Single fused XLA pass: flatten spatial (no transpose), pad TH cols, bf16.
    x_flat = jnp.pad(x.reshape(n, ic, h * width), ((0, 0), (0, 0), (0, lx - h * width)))
    x_flat = x_flat.astype(jnp.bfloat16)
    w_bf16 = w_fused.astype(jnp.bfloat16)

    kernel = functools.partial(_conv_fused_kernel, kh=kh, kw=kw, width=width, tm=tm)

    # VMEM working set: double-buffered blocks + resident weights + temporaries.
    blk_bytes = 2 * (ic * tm * 2 + ic * th * 2 + oc * tm * 4) + oc * max(k_dim, 128) * 2
    tmp_bytes = ic * (tm + th) * 2 + 2 * k_dim * tm * 2 + oc * tm * 4
    # Scales with the tile (no artificial 30 MiB cap); stays under v7x's 64 MiB.
    vmem_limit = int(min(48 << 20, max(2 * (blk_bytes + tmp_bytes), 16 << 20)))

    cost = pl.CostEstimate(
        flops=2 * n * mpad * k_dim * oc,
        transcendentals=0,
        bytes_accessed=n * ic * (mpad + ntiles * th) * 2 + oc * k_dim * 2
        + n * oc * mpad * 4,
    )

    out_flat = pl.pallas_call(
        kernel,
        out_shape=jax.ShapeDtypeStruct((n, oc, mpad), jnp.float32),
        grid=(n, ntiles),
        in_specs=[
            pl.BlockSpec((1, ic, tm), lambda b, j: (b, 0, j)),            # tile
            pl.BlockSpec((1, ic, th), lambda b, j: (b, 0, (j + 1) * r)),  # halo
            pl.BlockSpec((oc, k_dim), lambda b, j: (0, 0)),               # weights
        ],
        out_specs=pl.BlockSpec((1, oc, tm), lambda b, j: (b, 0, j)),
        compiler_params=pltpu.CompilerParams(
            dimension_semantics=("parallel", "parallel"),
            vmem_limit_bytes=vmem_limit,
        ),
        cost_estimate=cost,
    )(x_flat, x_flat, w_bf16)

    # Valid outputs are flat positions p = oy*width + ox with oy < OH, ox < OW.
    out = out_flat[:, :, :oh * width].reshape(n, oc, oh, width)[:, :, :, :ow]
    return out


def gabor_conv2d_forward(x, freq, theta, sigma, psi, kernel_size):
    kh = kw = kernel_size
    w_fused = compute_gabor_weights(freq, theta, sigma, psi, kh, kw)
    return conv2d_pallas(x, w_fused, kh, kw)


# TODO(synk): the training/eval `is_calculated` weight-caching flag is host-side
# Python control flow in the original module; here weights are synthesized every call.


# Pure-JAX transcription of GaborConv2d.calculate_weights() for validation.
def gabor_weights_ref(freq, theta, sigma, psi, kh, kw):
    delta = 0.001
    x0 = math.ceil(kh / 2)
    y0 = math.ceil(kw / 2)
    a = jnp.linspace(-x0 + 1, x0 + 0, kh, dtype=jnp.float32)
    b = jnp.linspace(-y0 + 1, y0 + 0, kw, dtype=jnp.float32)
    y, x = jnp.meshgrid(a, b, indexing="ij")
    f = freq[:, :, None, None]
    t = theta[:, :, None, None]
    s = sigma[:, :, None, None]
    p = psi[:, :, None, None]
    rotx = x * jnp.cos(t) + y * jnp.sin(t)
    roty = -x * jnp.sin(t) + y * jnp.cos(t)
    g = jnp.exp(-0.5 * ((rotx ** 2 + roty ** 2) / (s + delta) ** 2))
    g = g * jnp.cos(f * rotx + p)
    g = g / (2.0 * math.pi * s ** 2)
    return g  # (OC, IC, KH, KW) — PyTorch conv weight layout


# ----------------------------------------------------------------------------
if __name__ == "__main__":
    key = jax.random.PRNGKey(0)
    k1, k2, k3, k4 = jax.random.split(key, 4)

    in_channels, out_channels, kernel_size = 4, 8, 3
    batch, height, width = 2, 16, 16

    # Deterministic parameter init mirroring GaborConv2d.__init__
    freq = (math.pi / 2) * (
        math.sqrt(2.0)
        ** (-jax.random.randint(k1, (out_channels, in_channels), 0, 5).astype(jnp.float32))
    )
    theta = (math.pi / 8) * jax.random.randint(
        k2, (out_channels, in_channels), 0, 8
    ).astype(jnp.float32)
    sigma = math.pi / freq
    psi = math.pi * jax.random.uniform(k3, (out_channels, in_channels), dtype=jnp.float32)

    x = jax.random.normal(k4, (batch, in_channels, height, width), dtype=jnp.float32)

    fwd = jax.jit(gabor_conv2d_forward, static_argnums=(5,))
    out = jax.block_until_ready(fwd(x, freq, theta, sigma, psi, kernel_size))
    assert out.shape == (batch, out_channels, height - kernel_size + 1, width - kernel_size + 1)

    # 1) Pallas Gabor weight bank vs a direct transcription of calculate_weights().
    w_fused = compute_gabor_weights(freq, theta, sigma, psi, kernel_size, kernel_size)
    w_oihw_pallas = jnp.transpose(
        w_fused.reshape(out_channels, kernel_size, kernel_size, in_channels), (0, 3, 1, 2)
    )
    w_oihw_ref = gabor_weights_ref(freq, theta, sigma, psi, kernel_size, kernel_size)
    assert jnp.allclose(w_oihw_pallas, w_oihw_ref, rtol=1e-4, atol=1e-5), float(
        jnp.max(jnp.abs(w_oihw_pallas - w_oihw_ref))
    )

    # 2) Full forward vs pure-JAX f32 conv with the reference weights.
    ref = jax.lax.conv_general_dilated(
        x, w_oihw_ref, window_strides=(1, 1), padding="VALID",
        dimension_numbers=("NCHW", "OIHW", "NCHW"),
    )
    # bf16 MXU operands (f32 accumulation) vs f32 reference -> looser tolerance.
    assert jnp.allclose(out, ref, rtol=2e-2, atol=2e-2), float(jnp.max(jnp.abs(out - ref)))

    print("KERNEL_OK")
</pallas_src>

<mosaic_0001>
module attributes {stable_mosaic.version = 11 : i64} {
  func.func @_conv_fused_kernel(%arg0: i32, %arg1: i32, %arg2: memref<1x4x256xbf16, #tpu.memory_space<vmem>>, %arg3: memref<1x4x128xbf16, #tpu.memory_space<vmem>>, %arg4: memref<8x36xbf16, #tpu.memory_space<vmem>>, %arg5: memref<1x8x256xf32, #tpu.memory_space<vmem>>) attributes {dimension_semantics = [#tpu.dimension_semantics<parallel>, #tpu.dimension_semantics<parallel>], iteration_bounds = array<i64: 2, 1>, scalar_prefetch = 0 : i64, scratch_operands = 0 : i64, tpu.core_type = #tpu.core_type<tc>, window_params = [{transform_indices = @transform_0, window_bounds = array<i64: 1, 4, 256>}, {transform_indices = @transform_1, window_bounds = array<i64: 1, 4, 128>}, {pipeline_mode = #tpu.pipeline_mode<synchronous>, transform_indices = @transform_2, window_bounds = array<i64: 8, 36>}, {transform_indices = @transform_3, window_bounds = array<i64: 1, 8, 256>}]} {
    %c0 = arith.constant 0 : index
    %c0_0 = arith.constant 0 : index
    %c0_1 = arith.constant 0 : index
    %0 = vector.load %arg2[%c0, %c0_0, %c0_1] : memref<1x4x256xbf16, #tpu.memory_space<vmem>>, vector<1x4x256xbf16>
    %1 = vector.shape_cast %0 : vector<1x4x256xbf16> to vector<4x256xbf16>
    %c0_2 = arith.constant 0 : index
    %c0_3 = arith.constant 0 : index
    %c0_4 = arith.constant 0 : index
    %2 = vector.load %arg3[%c0_2, %c0_3, %c0_4] : memref<1x4x128xbf16, #tpu.memory_space<vmem>>, vector<1x4x128xbf16>
    %3 = vector.shape_cast %2 : vector<1x4x128xbf16> to vector<4x128xbf16>
    %4 = tpu.concatenate %1, %3 in 1 : vector<4x256xbf16>, vector<4x128xbf16> -> vector<4x384xbf16>
    %5 = vector.extract_strided_slice %4 {offsets = [0, 0], sizes = [4, 256], strides = [1, 1]} : vector<4x384xbf16> to vector<4x256xbf16>
    %6 = vector.extract_strided_slice %4 {offsets = [0, 1], sizes = [4, 256], strides = [1, 1]} : vector<4x384xbf16> to vector<4x256xbf16>
    %7 = vector.extract_strided_slice %4 {offsets = [0, 2], sizes = [4, 256], strides = [1, 1]} : vector<4x384xbf16> to vector<4x256xbf16>
    %8 = vector.extract_strided_slice %4 {offsets = [0, 16], sizes = [4, 256], strides = [1, 1]} : vector<4x384xbf16> to vector<4x256xbf16>
    %9 = vector.extract_strided_slice %4 {offsets = [0, 17], sizes = [4, 256], strides = [1, 1]} : vector<4x384xbf16> to vector<4x256xbf16>
    %10 = vector.extract_strided_slice %4 {offsets = [0, 18], sizes = [4, 256], strides = [1, 1]} : vector<4x384xbf16> to vector<4x256xbf16>
    %11 = vector.extract_strided_slice %4 {offsets = [0, 32], sizes = [4, 256], strides = [1, 1]} : vector<4x384xbf16> to vector<4x256xbf16>
    %12 = vector.extract_strided_slice %4 {offsets = [0, 33], sizes = [4, 256], strides = [1, 1]} : vector<4x384xbf16> to vector<4x256xbf16>
    %13 = vector.extract_strided_slice %4 {offsets = [0, 34], sizes = [4, 256], strides = [1, 1]} : vector<4x384xbf16> to vector<4x256xbf16>
    %14 = tpu.concatenate %5, %6, %7, %8, %9, %10, %11, %12, %13 in 0 : vector<4x256xbf16>, vector<4x256xbf16>, vector<4x256xbf16>, vector<4x256xbf16>, vector<4x256xbf16>, vector<4x256xbf16>, vector<4x256xbf16>, vector<4x256xbf16>, vector<4x256xbf16> -> vector<36x256xbf16>
    %c0_5 = arith.constant 0 : index
    %c0_6 = arith.constant 0 : index
    %15 = vector.load %arg4[%c0_5, %c0_6] : memref<8x36xbf16, #tpu.memory_space<vmem>>, vector<8x36xbf16>
    %cst = arith.constant dense<0.000000e+00> : vector<8x256xf32>
    %16 = tpu.matmul %15, %14, %cst {dimension_numbers = #tpu.dot_dimension_numbers<[1], [0], [0], [1], [0, 0, 1, 1], [], []>} : vector<8x36xbf16>, vector<36x256xbf16>, vector<8x256xf32> -> vector<8x256xf32>
    %c0_7 = arith.constant 0 : index
    %c0_8 = arith.constant 0 : index
    %c0_9 = arith.constant 0 : index
    %17 = vector.load %arg5[%c0_7, %c0_8, %c0_9] : memref<1x8x256xf32, #tpu.memory_space<vmem>>, vector<1x8x256xf32>
    %18 = vector.shape_cast %17 : vector<1x8x256xf32> to vector<8x256xf32>
    %19 = vector.shape_cast %16 : vector<8x256xf32> to vector<1x8x256xf32>
    tpu.vector_store %arg5[%c0_7, %c0_8, %c0_9], %19 {strides = array<i32>} : memref<1x8x256xf32, #tpu.memory_space<vmem>>, vector<1x8x256xf32>,
    return
  }
  func.func @transform_0(%arg0: i32, %arg1: i32) -> (i32, i32, i32) {
    %c0_i32 = arith.constant 0 : i32
    %c0_i32_0 = arith.constant 0 : i32
    return %arg0, %c0_i32, %arg1 : i32, i32, i32
  }
  func.func @transform_1(%arg0: i32, %arg1: i32) -> (i32, i32, i32) {
    %c1_i32 = arith.constant 1 : i32
    %0 = arith.addi %arg1, %c1_i32 : i32
    %c2_i32 = arith.constant 2 : i32
    %1 = arith.muli %0, %c2_i32 : i32
    %c0_i32 = arith.constant 0 : i32
    %c0_i32_0 = arith.constant 0 : i32
    return %arg0, %c0_i32, %1 : i32, i32, i32
  }
  func.func @transform_2(%arg0: i32, %arg1: i32) -> (i32, i32) {
    %c0_i32 = arith.constant 0 : i32
    %c0_i32_0 = arith.constant 0 : i32
    %c0_i32_1 = arith.constant 0 : i32
    return %c0_i32, %c0_i32_0 : i32, i32
  }
  func.func @transform_3(%arg0: i32, %arg1: i32) -> (i32, i32, i32) {
    %c0_i32 = arith.constant 0 : i32
    %c0_i32_0 = arith.constant 0 : i32
    return %arg0, %c0_i32, %arg1 : i32, i32, i32
  }
}

module attributes {stable_mosaic.version = 11 : i64} {
  func.func @gabor_weight_kernel(%arg0: memref<8x36xf32, #tpu.memory_space<vmem>>, %arg1: memref<8x36xf32, #tpu.memory_space<vmem>>, %arg2: memref<8x36xf32, #tpu.memory_space<vmem>>, %arg3: memref<8x36xf32, #tpu.memory_space<vmem>>, %arg4: memref<1x36xf32, #tpu.memory_space<vmem>>, %arg5: memref<1x36xf32, #tpu.memory_space<vmem>>, %arg6: memref<8x36xf32, #tpu.memory_space<vmem>>) attributes {dimension_semantics = [], scalar_prefetch = 0 : i64, scratch_operands = 0 : i64, tpu.core_type = #tpu.core_type<tc>} {
    %c0 = arith.constant 0 : index
    %c0_0 = arith.constant 0 : index
    %0 = vector.load %arg0[%c0, %c0_0] : memref<8x36xf32, #tpu.memory_space<vmem>>, vector<8x36xf32>
    %c0_1 = arith.constant 0 : index
    %c0_2 = arith.constant 0 : index
    %1 = vector.load %arg1[%c0_1, %c0_2] : memref<8x36xf32, #tpu.memory_space<vmem>>, vector<8x36xf32>
    %c0_3 = arith.constant 0 : index
    %c0_4 = arith.constant 0 : index
    %2 = vector.load %arg2[%c0_3, %c0_4] : memref<8x36xf32, #tpu.memory_space<vmem>>, vector<8x36xf32>
    %c0_5 = arith.constant 0 : index
    %c0_6 = arith.constant 0 : index
    %3 = vector.load %arg3[%c0_5, %c0_6] : memref<8x36xf32, #tpu.memory_space<vmem>>, vector<8x36xf32>
    %c0_7 = arith.constant 0 : index
    %c0_8 = arith.constant 0 : index
    %4 = vector.load %arg4[%c0_7, %c0_8] : memref<1x36xf32, #tpu.memory_space<vmem>>, vector<1x36xf32>
    %c0_9 = arith.constant 0 : index
    %c0_10 = arith.constant 0 : index
    %5 = vector.load %arg5[%c0_9, %c0_10] : memref<1x36xf32, #tpu.memory_space<vmem>>, vector<1x36xf32>
    %6 = math.sin %1 : vector<8x36xf32>
    %7 = math.cos %1 : vector<8x36xf32>
    %8 = vector.broadcast %4 : vector<1x36xf32> to vector<8x36xf32>
    %9 = arith.mulf %8, %7 : vector<8x36xf32>
    %10 = vector.broadcast %5 : vector<1x36xf32> to vector<8x36xf32>
    %11 = arith.mulf %10, %6 : vector<8x36xf32>
    %12 = arith.addf %9, %11 : vector<8x36xf32>
    %cst = arith.constant 0.000000e+00 : f32
    %13 = vector.broadcast %cst : f32 to vector<1x36xf32>
    %14 = arith.subf %13, %4 : vector<1x36xf32>
    %15 = vector.broadcast %14 : vector<1x36xf32> to vector<8x36xf32>
    %16 = arith.mulf %15, %6 : vector<8x36xf32>
    %17 = vector.broadcast %5 : vector<1x36xf32> to vector<8x36xf32>
    %18 = arith.mulf %17, %7 : vector<8x36xf32>
    %19 = arith.addf %16, %18 : vector<8x36xf32>
    %20 = arith.mulf %12, %12 : vector<8x36xf32>
    %21 = arith.mulf %19, %19 : vector<8x36xf32>
    %22 = arith.addf %20, %21 : vector<8x36xf32>
    %cst_11 = arith.constant 1.000000e-03 : f32
    %23 = vector.broadcast %cst_11 : f32 to vector<8x36xf32>
    %24 = arith.addf %2, %23 : vector<8x36xf32>
    %25 = arith.mulf %24, %24 : vector<8x36xf32>
    %26 = arith.divf %22, %25 : vector<8x36xf32>
    %cst_12 = arith.constant -5.000000e-01 : f32
    %27 = vector.broadcast %cst_12 : f32 to vector<8x36xf32>
    %28 = arith.mulf %27, %26 : vector<8x36xf32>
    %29 = math.exp %28 : vector<8x36xf32>
    %30 = arith.mulf %0, %12 : vector<8x36xf32>
    %31 = arith.addf %30, %3 : vector<8x36xf32>
    %32 = math.cos %31 : vector<8x36xf32>
    %33 = arith.mulf %29, %32 : vector<8x36xf32>
    %34 = arith.mulf %2, %2 : vector<8x36xf32>
    %cst_13 = arith.constant 6.28318548 : f32
    %35 = vector.broadcast %cst_13 : f32 to vector<8x36xf32>
    %36 = arith.mulf %35, %34 : vector<8x36xf32>
    %37 = arith.divf %33, %36 : vector<8x36xf32>
    %c0_14 = arith.constant 0 : index
    %c0_15 = arith.constant 0 : index
    %38 = vector.load %arg6[%c0_14, %c0_15] : memref<8x36xf32, #tpu.memory_space<vmem>>, vector<8x36xf32>
    tpu.vector_store %arg6[%c0_14, %c0_15], %37 {strides = array<i32>} : memref<8x36xf32, #tpu.memory_space<vmem>>, vector<8x36xf32>,
    return
  }
}

</mosaic_0001>

<llo_original>
// kernel: tile.24
$region0: #{tile.24}
  %s0 = inlined_call_operand.vmem [shape: f32[8,9,4], index: 0, kind: input, shape index: {}]
  %s1 = inlined_call_operand.vmem [shape: f32[8,36], index: 1, kind: output, shape index: {}]
  $region1: #{tile.24} parent=0
    #allocation0 [shape = 'u8[36864]{0}', space=vmem, size = 0x9000, scoped, tag = 'scoped mem for input reshape']
    %s3 = ssub.s32 16, 1
    %s4 = scalar_lea.vmem %s0, 32
    %v5 = vld [vmem:[%s4] sm:%s3]
    %s6 = scalar_lea.vmem [#allocation0], 64
    %7 = vst [vmem:[%s6] sm:%s3] %v5
    %s8 = scalar_lea.vmem %s0, 28
    %v9 = vld [vmem:[%s8] sm:%s3]
    %s10 = scalar_lea.vmem [#allocation0], 56
    %11 = vst [vmem:[%s10] sm:%s3] %v9
    %s12 = scalar_lea.vmem %s0, 24
    %v13 = vld [vmem:[%s12] sm:%s3]
    %s14 = scalar_lea.vmem [#allocation0], 48
    %15 = vst [vmem:[%s14] sm:%s3] %v13
    %s16 = scalar_lea.vmem %s0, 20
    %v17 = vld [vmem:[%s16] sm:%s3]
    %s18 = scalar_lea.vmem [#allocation0], 40
    %19 = vst [vmem:[%s18] sm:%s3] %v17
    %s20 = scalar_lea.vmem %s0, 16
    %v21 = vld [vmem:[%s20] sm:%s3]
    %s22 = scalar_lea.vmem [#allocation0], 32
    %23 = vst [vmem:[%s22] sm:%s3] %v21
    %s24 = scalar_lea.vmem %s0, 12
    %v25 = vld [vmem:[%s24] sm:%s3]
    %s26 = scalar_lea.vmem [#allocation0], 24
    %27 = vst [vmem:[%s26] sm:%s3] %v25
    %s28 = scalar_lea.vmem %s0, 8
    %v29 = vld [vmem:[%s28] sm:%s3]
    %s30 = scalar_lea.vmem [#allocation0], 16
    %31 = vst [vmem:[%s30] sm:%s3] %v29
    %s32 = scalar_lea.vmem %s0, 4
    %v33 = vld [vmem:[%s32] sm:%s3]
    %s34 = scalar_lea.vmem [#allocation0], 8
    %35 = vst [vmem:[%s34] sm:%s3] %v33
    %v36 = vld [vmem:[%s0] sm:%s3]
    %37 = vst [vmem:[#allocation0] sm:%s3] %v36
    %v38 = vld [vmem:[#allocation0] sm:$0xf]
    %vm39 = vcmask 64512
    %40 = vst.msk [vmem:[%s1] sm:$0xf] %vm39, %v38
    %s41 = scalar_lea.vmem [#allocation0], 8
    %v42 = vld [vmem:[%s41] sm:$0xf]
    %vm43 = vcmask 64512
    %s44 = scalar_lea.vmem %s1, 4
    %45 = vst.msk [vmem:[%s44] sm:$0xf] %vm43, %v42
    %s46 = scalar_lea.vmem [#allocation0], 16
    %v47 = vld [vmem:[%s46] sm:$0xf]
    %vm48 = vcmask 64512
    %s49 = scalar_lea.vmem %s1, 8
    %50 = vst.msk [vmem:[%s49] sm:$0xf] %vm48, %v47
    %s51 = scalar_lea.vmem [#allocation0], 24
    %v52 = vld [vmem:[%s51] sm:$0xf]
    %vm53 = vcmask 64512
    %s54 = scalar_lea.vmem %s1, 12
    %55 = vst.msk [vmem:[%s54] sm:$0xf] %vm53, %v52
    %s56 = scalar_lea.vmem [#allocation0], 32
    %v57 = vld [vmem:[%s56] sm:$0xf]
    %vm58 = vcmask 64512
    %s59 = scalar_lea.vmem %s1, 16
    %60 = vst.msk [vmem:[%s59] sm:$0xf] %vm58, %v57
    %s61 = scalar_lea.vmem [#allocation0], 40
    %v62 = vld [vmem:[%s61] sm:$0xf]
    %vm63 = vcmask 64512
    %s64 = scalar_lea.vmem %s1, 20
    %65 = vst.msk [vmem:[%s64] sm:$0xf] %vm63, %v62
    %s66 = scalar_lea.vmem [#allocation0], 48
    %v67 = vld [vmem:[%s66] sm:$0xf]
    %vm68 = vcmask 64512
    %s69 = scalar_lea.vmem %s1, 24
    %70 = vst.msk [vmem:[%s69] sm:$0xf] %vm68, %v67
    %s71 = scalar_lea.vmem [#allocation0], 56
    %v72 = vld [vmem:[%s71] sm:$0xf]
    %vm73 = vcmask 64512
    %s74 = scalar_lea.vmem %s1, 28
    %75 = vst.msk [vmem:[%s74] sm:$0xf] %vm73, %v72
    %s76 = scalar_lea.vmem [#allocation0], 64
    %v77 = vld [vmem:[%s76] sm:$0xf]
    %vm78 = vcmask 64512
    %s79 = scalar_lea.vmem %s1, 32
    %80 = vst.msk [vmem:[%s79] sm:$0xf] %vm78, %v77

// kernel: gabor_conv2d_forward.2
$region0: #{gabor_conv2d_forward.2}
  #allocation0 [shape = 'u32[]', space=smem, size = 0x4, offset = 0x4, fixed_abs, tag = 'smem constant byte address 0x4 - core index']
  #allocation1 [shape = 'u32[72,128]{1,0:T(1,128)}', space=vmem, size = 0x9000, scoped, tag = 'internal scratch']
  %s0 = inlined_call_operand.vmem [shape: f32[8,36], index: 0, kind: input, shape index: {}]
  %s1 = inlined_call_operand.vmem [shape: f32[8,36], index: 1, kind: input, shape index: {}]
  %s2 = inlined_call_operand.vmem [shape: f32[8,36], index: 2, kind: input, shape index: {}]
  %s3 = inlined_call_operand.vmem [shape: f32[8,36], index: 3, kind: input, shape index: {}]
  %s4 = inlined_call_operand.vmem [shape: f32[1,36], index: 4, kind: input, shape index: {}]
  %s5 = inlined_call_operand.vmem [shape: f32[1,36], index: 5, kind: input, shape index: {}]
  %s6 = inlined_call_operand.vmem [shape: f32[8,36], index: 6, kind: output, shape index: {}]
  %s7 = sld [smem:[#allocation0]]
  $region34: #{gabor_conv2d_forward.2} parent=0
    _
  %s9 = ssub.s32 1, %s7
  %s10 = scalar_select 0, %s9, %s7
  // Predicated region
  $region2: #{gabor_conv2d_forward.2} parent=0 // pred_check
    _
  $region3: #{gabor_conv2d_forward.2} parent=0 // pred_check_branch
    %12 = sbr.rel (0) target = $region5
  $region4: #{gabor_conv2d_forward.2} parent=0 // pred_region
    _
  $region5: #{gabor_conv2d_forward.2} parent=0 // pred_fallthru
    _
  // Predicated region
  $region6: #{gabor_conv2d_forward.2} parent=0 // pred_check
    _
  $region7: #{gabor_conv2d_forward.2} parent=0 // pred_check_branch
    %14 = sbr.rel (0) target = $region9
  $region8: #{gabor_conv2d_forward.2} parent=0 // pred_region
    _
  $region9: #{gabor_conv2d_forward.2} parent=0 // pred_fallthru
    _
  // Predicated region
  $region10: #{gabor_conv2d_forward.2} parent=0 // pred_check
    _
  $region11: #{gabor_conv2d_forward.2} parent=0 // pred_check_branch
    %16 = sbr.rel (0) target = $region13
  $region12: #{gabor_conv2d_forward.2} parent=0 // pred_region
    _
  $region13: #{gabor_conv2d_forward.2} parent=0 // pred_fallthru
    _
  // Predicated region
  $region14: #{gabor_conv2d_forward.2} parent=0 // pred_check
    _
  $region15: #{gabor_conv2d_forward.2} parent=0 // pred_check_branch
    %18 = sbr.rel (0) target = $region17
  $region16: #{gabor_conv2d_forward.2} parent=0 // pred_region
    _
  $region17: #{gabor_conv2d_forward.2} parent=0 // pred_fallthru
    _
  // Predicated region
  $region18: #{gabor_conv2d_forward.2} parent=0 // pred_check
    _
  $region19: #{gabor_conv2d_forward.2} parent=0 // pred_check_branch
    %20 = sbr.rel (0) target = $region21
  $region20: #{gabor_conv2d_forward.2} parent=0 // pred_region
    _
  $region21: #{gabor_conv2d_forward.2} parent=0 // pred_fallthru
    _
  // Predicated region
  $region22: #{gabor_conv2d_forward.2} parent=0 // pred_check
    _
  $region23: #{gabor_conv2d_forward.2} parent=0 // pred_check_branch
    %22 = sbr.rel (0) target = $region25
  $region24: #{gabor_conv2d_forward.2} parent=0 // pred_region
    _
  $region25: #{gabor_conv2d_forward.2} parent=0 // pred_fallthru
    _
  %v23 = vld [vmem:[%s0] sm:$0xff]
  %v24 = vld [vmem:[%s1] sm:$0xff]
  %v25 = vld [vmem:[%s2] sm:$0xff]
  %v26 = vld [vmem:[%s3] sm:$0xff]
  %v27 = vld [vmem:[%s4] sm:$0x1]
  %v28 = vld [vmem:[%s5] sm:$0x1]
  %v29 = vand.u32 2147483647, %v24
  %vm30 = vcmp.le.f32.partialorder %v29, 0.7853982
  %vm31 = vcmp.lt.s32.totalorder %v24, 0
  %v32 = vand.u32 %v24, 2139095040
  %v33 = vshrl.u32 %v32, 23
  %v34 = vsub.s32 %v33, 127
  %v35 = vand.u32 2147483647, %v24
  %v36 = vand.u32 %v35, 8388607
  %v37 = vor.u32 %v36, 8388608
  %v38 = vsub.s32 0, %v37
  %v39 = vadd.s32 %v34, 1
  %vm40 = vcmp.gt.s32.totalorder %v39, 0
  %v41 = vsel %vm40, %v39, 0
  %v42 = vshrl.u32 %v41, 5
  %v43 = vand.u32 %v41, 31
  %v44 = vsub.s32 32, %v43
  %v45 = vshrl.u32 683565275, %v44
  %v46 = vshll.u32 683565275, %v43
  %v47 = vshrl.u32 2475754826, %v44
  %v48 = vor.u32 %v46, %v47
  %v49 = vshll.u32 2475754826, %v43
  %v50 = vshrl.u32 2131351028, %v44
  %v51 = vor.u32 %v49, %v50
  %v52 = vshll.u32 2131351028, %v43
  %v53 = vshrl.u32 2102212464, %v44
  %v54 = vor.u32 %v52, %v53
  %v55 = vshll.u32 2102212464, %v43
  %v56 = vshrl.u32 920167782, %v44
  %v57 = vor.u32 %v55, %v56
  %v58 = vshll.u32 920167782, %v43
  %v59 = vshrl.u32 1326507024, %v44
  %v60 = vor.u32 %v58, %v59
  %vm61 = vcmp.lt.s32.totalorder %v42, 1
  %vm62 = vcmp.lt.s32.totalorder %v42, 2
  %vm63 = vcmp.lt.s32.totalorder %v42, 3
  %vm64 = vcmp.lt.s32.totalorder %v42, 4
  %v65 = vsel %vm61, %v45, %v48
  %v66 = vsel %vm64, %v54, 2102212464
  %v67 = vsel %vm63, %v51, %v66
  %v68 = vsel %vm62, %v65, %v67
  %v69 = vsel %vm61, %v48, %v51
  %v70 = vsel %vm64, %v57, 920167782
  %v71 = vsel %vm63, %v54, %v70
  %v72 = vsel %vm62, %v69, %v71
  %v73 = vsel %vm61, %v51, %v54
  %v74 = vsel %vm64, %v60, 1326507024
  %v75 = vsel %vm63, %v57, %v74
  %v76 = vsel %vm62, %v73, %v75
  %v77 = vshll.u32 %v37, 8
  %v78 = vand.u32 %v77, 65535
  %v79 = vshrl.u32 %v77, 16
  %v80 = vand.u32 %v76, 65535
  %v81 = vshrl.u32 %v76, 16
  %v82 = vmul.u32 %v78, %v80
  %v83 = vmul.u32 %v78, %v81
  %v84 = vmul.u32 %v79, %v80
  %v85 = vmul.u32 %v79, %v81
  %v86 = vshll.u32 %v83, 16
  %v87 = vshrl.u32 %v83, 16
  %v88 = vshll.u32 %v84, 16
  %v89 = vshrl.u32 %v84, 16
  %vm90 = vc.u32 %v82, %v86
  %v91 = vsel %vm90, 1, 0
  %v92 = vadd.s32 %v82, %v86
  %v93 = vadd.s32 %v85, %v91
  %vm94 = vc.u32 %v92, %v88
  %v95 = vsel %vm94, 1, 0
  %v96 = vadd.s32 %v92, %v88
  %v97 = vadd.s32 %v93, %v95
  %v98 = vadd.s32 %v97, %v87
  %v99 = vadd.s32 %v98, %v89
  %v100 = vand.u32 %v77, 65535
  %v101 = vshrl.u32 %v77, 16
  %v102 = vand.u32 %v72, 65535
  %v103 = vshrl.u32 %v72, 16
  %v104 = vmul.u32 %v100, %v102
  %v105 = vmul.u32 %v100, %v103
  %v106 = vmul.u32 %v101, %v102
  %v107 = vmul.u32 %v101, %v103
  %v108 = vshll.u32 %v105, 16
  %v109 = vshrl.u32 %v105, 16
  %v110 = vshll.u32 %v106, 16
  %v111 = vshrl.u32 %v106, 16
  %vm112 = vc.u32 %v104, %v108
  %v113 = vsel %vm112, 1, 0
  %v114 = vadd.s32 %v104, %v108
  %v115 = vadd.s32 %v107, %v113
  %vm116 = vc.u32 %v114, %v110
  %v117 = vsel %vm116, 1, 0
  %v118 = vadd.s32 %v114, %v110
  %v119 = vadd.s32 %v115, %v117
  %v120 = vadd.s32 %v119, %v109
  %v121 = vadd.s32 %v120, %v111
  %v122 = vmul.u32 %v77, %v68
  %v123 = vadd.s32 %v99, %v118
  %vm124 = vc.u32 %v99, %v118
  %v125 = vadd.s32 %v121, 1
  %v126 = vsel %vm124, %v125, %v121
  %v127 = vadd.s32 %v122, %v126
  %v128 = vadd.s32 %v127, 536870912
  %v129 = vshrl.u32 %v128, 30
  %v130 = vshll.u32 %v129, 30
  %v131 = vsub.s32 %v127, %v130
  %vm132 = vcmp.lt.s32.totalorder %v131, 0
  %v133 = vsub.s32 0, %v131
  %v134 = vsel %vm132, %v133, %v131
  %v135 = vclz %v134
  %v136 = vsub.s32 %v135, 2
  %vm137 = vcmp.gt.s32.totalorder 0, %v136
  %v138 = vsel %vm137, 0, %v136
  %v139 = vsub.s32 32, %v138
  %v140 = vshll.u32 %v131, %v138
  %v141 = vshrl.u32 %v123, %v139
  %v142 = vor.u32 %v140, %v141
  %v143 = vsub.s32 4294967266, %v138
  %v144 = vadd.s32 %v143, 127
  %v145 = vshll.u32 %v144, 23
  %v146 = vor.u32 4788187, %v145
  %v147 = vand.u32 2147483647, %v146
  %v149 = vcvt.s32.f32 %v142
  %v150 = vmul.f32 %v149, %v147
  %v151 = vxor.u32 %v150, 2147483648
  %v152 = vsel %vm31, %v151, %v150
  %v153 = vsub.s32 4, %v129
  %v154 = vsel %vm31, %v153, %v129
  %v155 = vsel %vm30, %v24, %v152
  %v156 = vsel %vm30, 0, %v154
  %v157 = vmul.f32 %v155, %v155
  %v158 = vmul.f32 %v157, -0.001358992
  %v159 = vadd.f32 %v158, 0.041655596
  %v160 = vmul.f32 %v157, %v159
  %v161 = vadd.f32 %v160, -0.4999988
  %v162 = vmul.f32 %v157, %v161
  %v163 = vadd.f32 1.0, %v162
  %v164 = vmul.f32 %v155, %v155
  %v165 = vmul.f32 %v164, -0.00019511016
  %v166 = vadd.f32 %v165, 0.008332121
  %v167 = vmul.f32 %v164, %v166
  %v168 = vadd.f32 %v167, -0.16666654
  %v169 = vmul.f32 %v164, %v168
  %v170 = vadd.f32 %v169, 1.0
  %v171 = vmul.f32 %v170, %v155
  %vm172 = vweird.f32 %v24
  %v173 = vadd.s32 %v156, 3
  %v174 = vand.u32 %v173, 3
  %vm175 = vcmp.lt.s32.totalorder %v174, 2
  %vm176 = vcmp.eq.s32.totalorder %v174, 0
  %v177 = vxor.u32 %v171, 2147483648
  %v178 = vsel %vm176, %v163, %v177
  %vm179 = vcmp.eq.s32.totalorder %v174, 2
  %v180 = vxor.u32 %v163, 2147483648
  %v181 = vsel %vm179, %v180, %v171
  %v182 = vsel %vm175, %v178, %v181
  %v183 = vsel %vm172, nan, %v182
  %v184 = vand.u32 2147483647, %v24
  %vm185 = vcmp.le.f32.partialorder %v184, 0.7853982
  %vm186 = vcmp.lt.s32.totalorder %v24, 0
  %v187 = vand.u32 %v24, 2139095040
  %v188 = vshrl.u32 %v187, 23
  %v189 = vsub.s32 %v188, 127
  %v190 = vand.u32 2147483647, %v24
  %v191 = vand.u32 %v190, 8388607
  %v192 = vor.u32 %v191, 8388608
  %v193 = vsub.s32 0, %v192
  %v194 = vadd.s32 %v189, 1
  %vm195 = vcmp.gt.s32.totalorder %v194, 0
  %v196 = vsel %vm195, %v194, 0
  %v197 = vshrl.u32 %v196, 5
  %v198 = vand.u32 %v196, 31
  %v199 = vsub.s32 32, %v198
  %v200 = vshrl.u32 683565275, %v199
  %v201 = vshll.u32 683565275, %v198
  %v202 = vshrl.u32 2475754826, %v199
  %v203 = vor.u32 %v201, %v202
  %v204 = vshll.u32 2475754826, %v198
  %v205 = vshrl.u32 2131351028, %v199
  %v206 = vor.u32 %v204, %v205
  %v207 = vshll.u32 2131351028, %v198
  %v208 = vshrl.u32 2102212464, %v199
  %v209 = vor.u32 %v207, %v208
  %v210 = vshll.u32 2102212464, %v198
  %v211 = vshrl.u32 920167782, %v199
  %v212 = vor.u32 %v210, %v211
  %v213 = vshll.u32 920167782, %v198
  %v214 = vshrl.u32 1326507024, %v199
  %v215 = vor.u32 %v213, %v214
  %vm216 = vcmp.lt.s32.totalorder %v197, 1
  %vm217 = vcmp.lt.s32.totalorder %v197, 2
  %vm218 = vcmp.lt.s32.totalorder %v197, 3
  %vm219 = vcmp.lt.s32.totalorder %v197, 4
  %v220 = vsel %vm216, %v200, %v203
  %v221 = vsel %vm219, %v209, 2102212464
  %v222 = vsel %vm218, %v206, %v221
  %v223 = vsel %vm217, %v220, %v222
  %v224 = vsel %vm216, %v203, %v206
  %v225 = vsel %vm219, %v212, 920167782
  %v226 = vsel %vm218, %v209, %v225
  %v227 = vsel %vm217, %v224, %v226
  %v228 = vsel %vm216, %v206, %v209
  %v229 = vsel %vm219, %v215, 1326507024
  %v230 = vsel %vm218, %v212, %v229
  %v231 = vsel %vm217, %v228, %v230
  %v232 = vshll.u32 %v192, 8
  %v233 = vand.u32 %v232, 65535
  %v234 = vshrl.u32 %v232, 16
  %v235 = vand.u32 %v231, 65535
  %v236 = vshrl.u32 %v231, 16
  %v237 = vmul.u32 %v233, %v235
  %v238 = vmul.u32 %v233, %v236
  %v239 = vmul.u32 %v234, %v235
  %v240 = vmul.u32 %v234, %v236
  %v241 = vshll.u32 %v238, 16
  %v242 = vshrl.u32 %v238, 16
  %v243 = vshll.u32 %v239, 16
  %v244 = vshrl.u32 %v239, 16
  %vm245 = vc.u32 %v237, %v241
  %v246 = vsel %vm245, 1, 0
  %v247 = vadd.s32 %v237, %v241
  %v248 = vadd.s32 %v240, %v246
  %vm249 = vc.u32 %v247, %v243
  %v250 = vsel %vm249, 1, 0
  %v251 = vadd.s32 %v247, %v243
  %v252 = vadd.s32 %v248, %v250
  %v253 = vadd.s32 %v252, %v242
  %v254 = vadd.s32 %v253, %v244
  %v255 = vand.u32 %v232, 65535
  %v256 = vshrl.u32 %v232, 16
  %v257 = vand.u32 %v227, 65535
  %v258 = vshrl.u32 %v227, 16
  %v259 = vmul.u32 %v255, %v257
  %v260 = vmul.u32 %v255, %v258
  %v261 = vmul.u32 %v256, %v257
  %v262 = vmul.u32 %v256, %v258
  %v263 = vshll.u32 %v260, 16
  %v264 = vshrl.u32 %v260, 16
  %v265 = vshll.u32 %v261, 16
  %v266 = vshrl.u32 %v261, 16
  %vm267 = vc.u32 %v259, %v263
  %v268 = vsel %vm267, 1, 0
  %v269 = vadd.s32 %v259, %v263
  %v270 = vadd.s32 %v262, %v268
  %vm271 = vc.u32 %v269, %v265
  %v272 = vsel %vm271, 1, 0
  %v273 = vadd.s32 %v269, %v265
  %v274 = vadd.s32 %v270, %v272
  %v275 = vadd.s32 %v274, %v264
  %v276 = vadd.s32 %v275, %v266
  %v277 = vmul.u32 %v232, %v223
  %v278 = vadd.s32 %v254, %v273
  %vm279 = vc.u32 %v254, %v273
  %v280 = vadd.s32 %v276, 1
  %v281 = vsel %vm279, %v280, %v276
  %v282 = vadd.s32 %v277, %v281
  %v283 = vadd.s32 %v282, 536870912
  %v284 = vshrl.u32 %v283, 30
  %v285 = vshll.u32 %v284, 30
  %v286 = vsub.s32 %v282, %v285
  %vm287 = vcmp.lt.s32.totalorder %v286, 0
  %v288 = vsub.s32 0, %v286
  %v289 = vsel %vm287, %v288, %v286
  %v290 = vclz %v289
  %v291 = vsub.s32 %v290, 2
  %vm292 = vcmp.gt.s32.totalorder 0, %v291
  %v293 = vsel %vm292, 0, %v291
  %v294 = vsub.s32 32, %v293
  %v295 = vshll.u32 %v286, %v293
  %v296 = vshrl.u32 %v278, %v294
  %v297 = vor.u32 %v295, %v296
  %v298 = vsub.s32 4294967266, %v293
  %v299 = vadd.s32 %v298, 127
  %v300 = vshll.u32 %v299, 23
  %v301 = vor.u32 4788187, %v300
  %v302 = vand.u32 2147483647, %v301
  %v304 = vcvt.s32.f32 %v297
  %v305 = vmul.f32 %v304, %v302
  %v306 = vxor.u32 %v305, 2147483648
  %v307 = vsel %vm186, %v306, %v305
  %v308 = vsub.s32 4, %v284
  %v309 = vsel %vm186, %v308, %v284
  %v310 = vsel %vm185, %v24, %v307
  %v311 = vsel %vm185, 0, %v309
  %v312 = vmul.f32 %v310, %v310
  %v313 = vmul.f32 %v312, -0.001358992
  %v314 = vadd.f32 %v313, 0.041655596
  %v315 = vmul.f32 %v312, %v314
  %v316 = vadd.f32 %v315, -0.4999988
  %v317 = vmul.f32 %v312, %v316
  %v318 = vadd.f32 1.0, %v317
  %v319 = vmul.f32 %v310, %v310
  %v320 = vmul.f32 %v319, -0.00019511016
  %v321 = vadd.f32 %v320, 0.008332121
  %v322 = vmul.f32 %v319, %v321
  %v323 = vadd.f32 %v322, -0.16666654
  %v324 = vmul.f32 %v319, %v323
  %v325 = vadd.f32 %v324, 1.0
  %v326 = vmul.f32 %v325, %v310
  %vm327 = vweird.f32 %v24
  %v328 = vand.u32 %v311, 3
  %vm329 = vcmp.lt.s32.totalorder %v328, 2
  %vm330 = vcmp.eq.s32.totalorder %v328, 0
  %v331 = vxor.u32 %v326, 2147483648
  %v332 = vsel %vm330, %v318, %v331
  %vm333 = vcmp.eq.s32.totalorder %v328, 2
  %v334 = vxor.u32 %v318, 2147483648
  %v335 = vsel %vm333, %v334, %v326
  %v336 = vsel %vm329, %v332, %v335
  %v337 = vsel %vm327, nan, %v336
  %v339 = vperm.slane %v27, 0
  %v341 = vmul.f32 %v339, %v337
  %v343 = vperm.slane %v28, 0
  %v345 = vmul.f32 %v343, %v183
  %v346 = vadd.f32 %v341, %v345
  %v347 = vsub.f32 0.0, %v27
  %v349 = vperm.slane %v347, 0
  %v351 = vmul.f32 %v349, %v183
  %v352 = vmul.f32 %v343, %v337
  %v353 = vadd.f32 %v351, %v352
  %v354 = vmul.f32 %v346, %v346
  %v355 = vmul.f32 %v353, %v353
  %v356 = vadd.f32 %v354, %v355
  %v357 = vadd.f32 %v25, 0.001
  %v358 = vmul.f32 %v357, %v357
  %v359 = vrcp.pop %v358
  %v360 = vmul.f32 %v358, %v359
  %v361 = vsub.f32 1.0, %v360
  %v362 = vmul.f32 %v359, %v361
  %v363 = vadd.f32 %v359, %v362
  %vm364 = vweird.f32 %v358
  %vm365 = vweird.f32 %v359
  %vm366 = vmor %vm364, %vm365
  %v367 = vsel %vm366, %v359, %v363
  %v368 = vand.u32 2147483647, %v358
  %vm369 = vcmp.eq.f32.partialorder %v368, 8.507059e+37
  %v370 = vand.u32 %v358, 2147483648
  %v371 = vor.u32 1.1754944e-38, %v370
  %v372 = vsel %vm369, %v371, %v367
  %v373 = vmul.f32 %v356, %v372
  %v374 = vmul.f32 %v373, -0.5
  %v375 = vmul.f32 %v374, 1.442695
  %v376 = vpow.pop %v375
  %v377 = vmul.f32 %v23, %v346
  %v378 = vadd.f32 %v377, %v26
  %v379 = vand.u32 2147483647, %v378
  %vm380 = vcmp.le.f32.partialorder %v379, 0.7853982
  %vm381 = vcmp.lt.s32.totalorder %v378, 0
  %v382 = vand.u32 %v378, 2139095040
  %v383 = vshrl.u32 %v382, 23
  %v384 = vsub.s32 %v383, 127
  %v385 = vand.u32 2147483647, %v378
  %v386 = vand.u32 %v385, 8388607
  %v387 = vor.u32 %v386, 8388608
  %v388 = vsub.s32 0, %v387
  %v389 = vadd.s32 %v384, 1
  %vm390 = vcmp.gt.s32.totalorder %v389, 0
  %v391 = vsel %vm390, %v389, 0
  %v392 = vshrl.u32 %v391, 5
  %v393 = vand.u32 %v391, 31
  %v394 = vsub.s32 32, %v393
  %v395 = vshrl.u32 683565275, %v394
  %v396 = vshll.u32 683565275, %v393
  %v397 = vshrl.u32 2475754826, %v394
  %v398 = vor.u32 %v396, %v397
  %v399 = vshll.u32 2475754826, %v393
  %v400 = vshrl.u32 2131351028, %v394
  %v401 = vor.u32 %v399, %v400
  %v402 = vshll.u32 2131351028, %v393
  %v403 = vshrl.u32 2102212464, %v394
  %v404 = vor.u32 %v402, %v403
  %v405 = vshll.u32 2102212464, %v393
  %v406 = vshrl.u32 920167782, %v394
  %v407 = vor.u32 %v405, %v406
  %v408 = vshll.u32 920167782, %v393
  %v409 = vshrl.u32 1326507024, %v394
  %v410 = vor.u32 %v408, %v409
  %vm411 = vcmp.lt.s32.totalorder %v392, 1
  %vm412 = vcmp.lt.s32.totalorder %v392, 2
  %vm413 = vcmp.lt.s32.totalorder %v392, 3
  %vm414 = vcmp.lt.s32.totalorder %v392, 4
  %v415 = vsel %vm411, %v395, %v398
  %v416 = vsel %vm414, %v404, 2102212464
  %v417 = vsel %vm413, %v401, %v416
  %v418 = vsel %vm412, %v415, %v417
  %v419 = vsel %vm411, %v398, %v401
  %v420 = vsel %vm414, %v407, 920167782
  %v421 = vsel %vm413, %v404, %v420
  %v422 = vsel %vm412, %v419, %v421
  %v423 = vsel %vm411, %v401, %v404
  %v424 = vsel %vm414, %v410, 1326507024
  %v425 = vsel %vm413, %v407, %v424
  %v426 = vsel %vm412, %v423, %v425
  %v427 = vshll.u32 %v387, 8
  %v428 = vand.u32 %v427, 65535
  %v429 = vshrl.u32 %v427, 16
  %v430 = vand.u32 %v426, 65535
  %v431 = vshrl.u32 %v426, 16
  %v432 = vmul.u32 %v428, %v430
  %v433 = vmul.u32 %v428, %v431
  %v434 = vmul.u32 %v429, %v430
  %v435 = vmul.u32 %v429, %v431
  %v436 = vshll.u32 %v433, 16
  %v437 = vshrl.u32 %v433, 16
  %v438 = vshll.u32 %v434, 16
  %v439 = vshrl.u32 %v434, 16
  %vm440 = vc.u32 %v432, %v436
  %v441 = vsel %vm440, 1, 0
  %v442 = vadd.s32 %v432, %v436
  %v443 = vadd.s32 %v435, %v441
  %vm444 = vc.u32 %v442, %v438
  %v445 = vsel %vm444, 1, 0
  %v446 = vadd.s32 %v442, %v438
  %v447 = vadd.s32 %v443, %v445
  %v448 = vadd.s32 %v447, %v437
  %v449 = vadd.s32 %v448, %v439
  %v450 = vand.u32 %v427, 65535
  %v451 = vshrl.u32 %v427, 16
  %v452 = vand.u32 %v422, 65535
  %v453 = vshrl.u32 %v422, 16
  %v454 = vmul.u32 %v450, %v452
  %v455 = vmul.u32 %v450, %v453
  %v456 = vmul.u32 %v451, %v452
  %v457 = vmul.u32 %v451, %v453
  %v458 = vshll.u32 %v455, 16
  %v459 = vshrl.u32 %v455, 16
  %v460 = vshll.u32 %v456, 16
  %v461 = vshrl.u32 %v456, 16
  %vm462 = vc.u32 %v454, %v458
  %v463 = vsel %vm462, 1, 0
  %v464 = vadd.s32 %v454, %v458
  %v465 = vadd.s32 %v457, %v463
  %vm466 = vc.u32 %v464, %v460
  %v467 = vsel %vm466, 1, 0
  %v468 = vadd.s32 %v464, %v460
  %v469 = vadd.s32 %v465, %v467
  %v470 = vadd.s32 %v469, %v459
  %v471 = vadd.s32 %v470, %v461
  %v472 = vmul.u32 %v427, %v418
  %v473 = vadd.s32 %v449, %v468
  %vm474 = vc.u32 %v449, %v468
  %v475 = vadd.s32 %v471, 1
  %v476 = vsel %vm474, %v475, %v471
  %v477 = vadd.s32 %v472, %v476
  %v478 = vadd.s32 %v477, 536870912
  %v479 = vshrl.u32 %v478, 30
  %v480 = vshll.u32 %v479, 30
  %v481 = vsub.s32 %v477, %v480
  %vm482 = vcmp.lt.s32.totalorder %v481, 0
  %v483 = vsub.s32 0, %v481
  %v484 = vsel %vm482, %v483, %v481
  %v485 = vclz %v484
  %v486 = vsub.s32 %v485, 2
  %vm487 = vcmp.gt.s32.totalorder 0, %v486
  %v488 = vsel %vm487, 0, %v486
  %v489 = vsub.s32 32, %v488
  %v490 = vshll.u32 %v481, %v488
  %v491 = vshrl.u32 %v473, %v489
  %v492 = vor.u32 %v490, %v491
  %v493 = vsub.s32 4294967266, %v488
  %v494 = vadd.s32 %v493, 127
  %v495 = vshll.u32 %v494, 23
  %v496 = vor.u32 4788187, %v495
  %v497 = vand.u32 2147483647, %v496
  %v499 = vcvt.s32.f32 %v492
  %v500 = vmul.f32 %v499, %v497
  %v501 = vxor.u32 %v500, 2147483648
  %v502 = vsel %vm381, %v501, %v500
  %v503 = vsub.s32 4, %v479
  %v504 = vsel %vm381, %v503, %v479
  %v505 = vsel %vm380, %v378, %v502
  %v506 = vsel %vm380, 0, %v504
  %v507 = vmul.f32 %v505, %v505
  %v508 = vmul.f32 %v507, -0.001358992
  %v509 = vadd.f32 %v508, 0.041655596
  %v510 = vmul.f32 %v507, %v509
  %v511 = vadd.f32 %v510, -0.4999988
  %v512 = vmul.f32 %v507, %v511
  %v513 = vadd.f32 1.0, %v512
  %v514 = vmul.f32 %v505, %v505
  %v515 = vmul.f32 %v514, -0.00019511016
  %v516 = vadd.f32 %v515, 0.008332121
  %v517 = vmul.f32 %v514, %v516
  %v518 = vadd.f32 %v517, -0.16666654
  %v519 = vmul.f32 %v514, %v518
  %v520 = vadd.f32 %v519, 1.0
  %v521 = vmul.f32 %v520, %v505
  %vm522 = vweird.f32 %v378
  %v523 = vand.u32 %v506, 3
  %vm524 = vcmp.lt.s32.totalorder %v523, 2
  %vm525 = vcmp.eq.s32.totalorder %v523, 0
  %v526 = vxor.u32 %v521, 2147483648
  %v527 = vsel %vm525, %v513, %v526
  %vm528 = vcmp.eq.s32.totalorder %v523, 2
  %v529 = vxor.u32 %v513, 2147483648
  %v530 = vsel %vm528, %v529, %v521
  %v531 = vsel %vm524, %v527, %v530
  %v532 = vsel %vm522, nan, %v531
  %v533 = vmul.f32 %v376, %v532
  %v534 = vmul.f32 %v25, %v25
  %v535 = vmul.f32 %v534, 6.2831855
  %v536 = vrcp.pop %v535
  %v537 = vmul.f32 %v535, %v536
  %v538 = vsub.f32 1.0, %v537
  %v539 = vmul.f32 %v536, %v538
  %v540 = vadd.f32 %v536, %v539
  %vm541 = vweird.f32 %v535
  %vm542 = vweird.f32 %v536
  %vm543 = vmor %vm541, %vm542
  %v544 = vsel %vm543, %v536, %v540
  %v545 = vand.u32 2147483647, %v535
  %vm546 = vcmp.eq.f32.partialorder %v545, 8.507059e+37
  %v547 = vand.u32 %v535, 2147483648
  %v548 = vor.u32 1.1754944e-38, %v547
  %v549 = vsel %vm546, %v548, %v544
  %v550 = vmul.f32 %v533, %v549
  %vm551 = vcmask 293888
  %552 = vst.msk [vmem:[%s6] sm:$0xff] %vm551, %v550
  // Predicated region
  $region26: #{gabor_conv2d_forward.2} parent=0 // pred_check
    _
  $region27: #{gabor_conv2d_forward.2} parent=0 // pred_check_branch
    %554 = sbr.rel (0) target = $region29
  $region28: #{gabor_conv2d_forward.2} parent=0 // pred_region
    _
  $region29: #{gabor_conv2d_forward.2} parent=0 // pred_fallthru
    _
  // Predicated region
  $region30: #{gabor_conv2d_forward.2} parent=0 // pred_check
    _
  $region31: #{gabor_conv2d_forward.2} parent=0 // pred_check_branch
    %556 = sbr.rel (0) target = $region33
  $region32: #{gabor_conv2d_forward.2} parent=0 // pred_region
    _
  $region33: #{gabor_conv2d_forward.2} parent=0 // pred_fallthru
    _

// kernel: gabor_conv2d_forward.3
$region0: #{gabor_conv2d_forward.3}
  #allocation0 [shape = 'u32[]', space=smem, size = 0x4, offset = 0x4, fixed_abs, tag = 'smem constant byte address 0x4 - core index']
  #allocation1 [shape = 'u32[72,128]{1,0:T(1,128)}', space=vmem, size = 0x9000, scoped, tag = 'internal scratch']
  %s0 = inlined_call_operand.vmem [shape: bf16[2,4,384], index: 0, kind: input, shape index: {}, may-alias: {0,1}]
  %s1 = inlined_call_operand.vmem [shape: bf16[2,4,384], index: 1, kind: input, shape index: {}, may-alias: {0,1}]
  %s2 = inlined_call_operand.vmem [shape: bf16[8,36], index: 2, kind: input, shape index: {}]
  %s3 = inlined_call_operand.vmem [shape: f32[2,8,256], index: 3, kind: output, shape index: {}]
  %s4 = sld [smem:[#allocation0]]
  $region45: #{gabor_conv2d_forward.3} parent=0
    _
  %s6 = ssub.s32 1, %s4
  %s7 = scalar_select 0, %s6, %s4
  loop: start=0, step=1, limit=4
  $region2: #{gabor_conv2d_forward.3} parent=0 // loop_pre_header
    _
  $region3: #{gabor_conv2d_forward.3} parent=0 // loop_header
    %s9 = sphi 0, %s13
    %p10 = scmp.ge.s32.totalorder %s9, 4
    %s16 = sphi 0, %s28
    %s17 = sphi 0, %s24
    %s18 = sphi 0, %s16
    %s19 = sphi 0, %s17
    %s20 = sphi 0, %s18
    %s21 = sphi 0, %s19
    %s33 = sphi 0, %s35
    %s36 = sphi 0, %s33
    %s37 = sphi 0, %s36
    %s53 = sphi 0, %s37
    %s65 = sphi 0, %s67
    %s68 = sphi 0, %s65
    %s69 = sphi 0, %s68
    %s85 = sphi 0, %s69
    %s89 = sphi 0, %s89
    %s91 = sphi 0, %s89
    %s92 = sphi 0, %s91
    %s106 = sphi 0, %s92
    %s114 = sphi 0, %s116
    %s117 = sphi 0, %s114
    %s118 = sphi 0, %s117
    %s134 = sphi 0, %s118
  $region4: #{gabor_conv2d_forward.3} parent=0 // loop_header_branch
    %12 = sbr.rel (%p10) target = $region8
  $region5: #{gabor_conv2d_forward.3} parent=0 // loop_body
    %s14 = ssub.s32 %s9, 1
    %s15 = ssub.s32 %s9, 2
    %s22 = sadd.s32 1, %s17
    %p23 = scmp.ge.s32.totalorder %s22, 1
    %s24 = scalar_select %p23, 0, %s22
    %s25 = sadd.s32 1, %s16
    %s26 = scalar_select %p23, %s25, %s16
    %p27 = scmp.ge.s32.totalorder %s26, 2
    %s28 = scalar_select %p27, 0, %s26
    %s29 = ssub.s32 %s16, %s28
    %s30 = ssub.s32 %s17, %s24
    %s31 = sor.u32 %s29, %s30
    %p32 = scmp.eq.s32.totalorder %s31, 0
    %s34 = sadd.s32 %s33, 1
    %s35 = scalar_select %p32, %s33, %s34
    %p38 = pneg %p32
    %p39 = scmp.eq.s32.totalorder %s9, 1
    %p40 = por %p38, %p39
    %p41 = scmp.ne.s32.totalorder %s33, %s36
    %p42 = scmp.eq.s32.totalorder %s9, 0
    %p43 = por %p41, %p42
    %p44 = scmp.ne.s32.totalorder %s33, %s36
    %p45 = scmp.eq.s32.totalorder %s14, 1
    %p46 = por %p44, %p45
    %p47 = scmp.ne.s32.totalorder %s36, %s37
    %p48 = scmp.eq.s32.totalorder %s14, 0
    %p49 = por %p47, %p48
    %p50 = scmp.ne.s32.totalorder %s36, %s37
    %p51 = scmp.eq.s32.totalorder %s15, 1
    %p52 = por %p50, %p51
    %p54 = scmp.ne.s32.totalorder %s37, %s53
    %p55 = scmp.eq.s32.totalorder %s15, 0
    %p56 = por %p54, %p55
    %s57 = sadd.s32 %s17, 1
    %s58 = smul.u32 %s57, 2
    %s59 = sadd.s32 %s24, 1
    %s60 = smul.u32 %s59, 2
    %s61 = ssub.s32 %s16, %s28
    %s62 = ssub.s32 %s58, %s60
    %s63 = sor.u32 %s61, %s62
    %p64 = scmp.eq.s32.totalorder %s63, 0
    %s66 = sadd.s32 %s65, 1
    %s67 = scalar_select %p64, %s65, %s66
    %p70 = pneg %p64
    %p71 = scmp.eq.s32.totalorder %s9, 1
    %p72 = por %p70, %p71
    %p73 = scmp.ne.s32.totalorder %s65, %s68
    %p74 = scmp.eq.s32.totalorder %s9, 0
    %p75 = por %p73, %p74
    %p76 = scmp.ne.s32.totalorder %s65, %s68
    %p77 = scmp.eq.s32.totalorder %s14, 1
    %p78 = por %p76, %p77
    %p79 = scmp.ne.s32.totalorder %s68, %s69
    %p80 = scmp.eq.s32.totalorder %s14, 0
    %p81 = por %p79, %p80
    %p82 = scmp.ne.s32.totalorder %s68, %s69
    %p83 = scmp.eq.s32.totalorder %s15, 1
    %p84 = por %p82, %p83
    %p86 = scmp.ne.s32.totalorder %s69, %s85
    %p87 = scmp.eq.s32.totalorder %s15, 0
    %p88 = por %p86, %p87
    %s90 = sadd.s32 %s89, 1
    %p93 = scmp.eq.s32.totalorder %s9, 1
    %p94 = scmp.ne.s32.totalorder %s89, %s91
    %p95 = scmp.eq.s32.totalorder %s9, 0
    %p96 = por %p94, %p95
    %p97 = scmp.ne.s32.totalorder %s89, %s91
    %p98 = scmp.eq.s32.totalorder %s14, 1
    %p99 = por %p97, %p98
    %p100 = scmp.ne.s32.totalorder %s91, %s92
    %p101 = scmp.eq.s32.totalorder %s14, 0
    %p102 = por %p100, %p101
    %p103 = scmp.ne.s32.totalorder %s91, %s92
    %p104 = scmp.eq.s32.totalorder %s15, 1
    %p105 = por %p103, %p104
    %p107 = scmp.ne.s32.totalorder %s92, %s106
    %p108 = scmp.eq.s32.totalorder %s15, 0
    %p109 = por %p107, %p108
    %s110 = ssub.s32 %s16, %s28
    %s111 = ssub.s32 %s17, %s24
    %s112 = sor.u32 %s110, %s111
    %p113 = scmp.eq.s32.totalorder %s112, 0
    %s115 = sadd.s32 %s114, 1
    %s116 = scalar_select %p113, %s114, %s115
    %p119 = pneg %p113
    %p120 = scmp.eq.s32.totalorder %s9, 1
    %p121 = por %p119, %p120
    %p122 = scmp.ne.s32.totalorder %s114, %s117
    %p123 = scmp.eq.s32.totalorder %s9, 0
    %p124 = por %p122, %p123
    %p125 = scmp.ne.s32.totalorder %s114, %s117
    %p126 = scmp.eq.s32.totalorder %s14, 1
    %p127 = por %p125, %p126
    %p128 = scmp.ne.s32.totalorder %s117, %s118
    %p129 = scmp.eq.s32.totalorder %s14, 0
    %p130 = por %p128, %p129
    %p131 = scmp.ne.s32.totalorder %s117, %s118
    %p132 = scmp.eq.s32.totalorder %s15, 1
    %p133 = por %p131, %p132
    %p135 = scmp.ne.s32.totalorder %s118, %s134
    %p136 = scmp.eq.s32.totalorder %s15, 0
    %p137 = por %p135, %p136
    %p138 = scmp.le.s32.totalorder 1, %s9
    %p139 = scmp.lt.s32.totalorder %s9, 3
    %p140 = pnand %p138, %p139
    %p141 = pneg %p140
    // Predicated region
    $region9: #{gabor_conv2d_forward.3} parent=5 // pred_check
      _
    $region10: #{gabor_conv2d_forward.3} parent=5 // pred_check_branch
      %143 = sbr.rel (%p140) target = $region12
    $region11: #{gabor_conv2d_forward.3} parent=5 // pred_region
      %s144 = ssub.s32 %s9, 1
      // Predicated region
      $region13: #{gabor_conv2d_forward.3} parent=11 // pred_check
        %p145 = pneg %p102
      $region14: #{gabor_conv2d_forward.3} parent=11 // pred_check_branch
        %147 = sbr.rel (%p145) target = $region16
      $region15: #{gabor_conv2d_forward.3} parent=11 // pred_region
        _
      $region16: #{gabor_conv2d_forward.3} parent=11 // pred_fallthru
        _
    $region12: #{gabor_conv2d_forward.3} parent=5 // pred_fallthru
      _
    %p148 = scmp.lt.s32.totalorder %s9, 2
    // Predicated region
    $region17: #{gabor_conv2d_forward.3} parent=5 // pred_check
      %p149 = pneg %p148
    $region18: #{gabor_conv2d_forward.3} parent=5 // pred_check_branch
      %151 = sbr.rel (%p149) target = $region20
    $region19: #{gabor_conv2d_forward.3} parent=5 // pred_region
      // Predicated region
      $region21: #{gabor_conv2d_forward.3} parent=19 // pred_check
        %p152 = pneg %p43
      $region22: #{gabor_conv2d_forward.3} parent=19 // pred_check_branch
        %154 = sbr.rel (%p152) target = $region24
      $region23: #{gabor_conv2d_forward.3} parent=19 // pred_region
        %s155 = smul.u32 2, %s17
        %s156 = ssub.s32 3, %s155
        %p157 = scmp.lt.s32.totalorder %s156, 2
        %s158 = scalar_select %p157, %s156, 2
        %s159 = smul.u32 2, %s158
        %p160 = scmp.lt.s32.totalorder %s16, 1
        %s161 = scalar_select %p160, %s16, 1
        %p162 = scmp.lt.s32.totalorder %s155, 2
        %s163 = scalar_select %p162, %s155, 2
        %s164 = smul.addr %s161, 3
        %s165 = sadd.s32 %s163, %s164
        %s166 = smul.addr %s165, 2
        %s167 = scalar_lea.vmem %s0, %s166
        %s168 = smul.u32 2, %s17
        %s169 = ssub.s32 3, %s168
        %p170 = scmp.lt.s32.totalorder %s169, 2
        %s171 = scalar_select %p170, %s169, 2
        %s172 = smul.u32 2, %s171
      $region24: #{gabor_conv2d_forward.3} parent=19 // pred_fallthru
        _
      // Predicated region
      $region25: #{gabor_conv2d_forward.3} parent=19 // pred_check
        %p173 = pneg %p75
      $region26: #{gabor_conv2d_forward.3} parent=19 // pred_check_branch
        %175 = sbr.rel (%p173) target = $region28
      $region27: #{gabor_conv2d_forward.3} parent=19 // pred_region
        %s176 = sadd.s32 %s17, 1
        %s177 = smul.u32 %s176, 2
        %p178 = scmp.lt.s32.totalorder %s16, 1
        %s179 = scalar_select %p178, %s16, 1
        %p180 = scmp.lt.s32.totalorder %s177, 2
        %s181 = scalar_select %p180, %s177, 2
        %s182 = smul.addr %s179, 3
        %s183 = sadd.s32 %s181, %s182
        %s184 = smul.addr %s183, 2
        %s185 = scalar_lea.vmem %s1, %s184
        %s186 = sadd.s32 %s17, 1
        %s187 = smul.u32 %s186, 2
      $region28: #{gabor_conv2d_forward.3} parent=19 // pred_fallthru
        _
    $region20: #{gabor_conv2d_forward.3} parent=5 // pred_fallthru
      _
    %p188 = scmp.le.s32.totalorder 1, %s9
    %p189 = scmp.lt.s32.totalorder %s9, 3
    %p190 = pnand %p188, %p189
    %p191 = pneg %p190
    // Predicated region
    $region29: #{gabor_conv2d_forward.3} parent=5 // pred_check
      _
    $region30: #{gabor_conv2d_forward.3} parent=5 // pred_check_branch
      %193 = sbr.rel (%p190) target = $region32
    $region31: #{gabor_conv2d_forward.3} parent=5 // pred_region
      %s194 = ssub.s32 %s9, 1
      %s195 = smul.u32 2, %s19
      %s196 = ssub.s32 3, %s195
      %p197 = scmp.lt.s32.totalorder %s196, 2
      %s198 = scalar_select %p197, %s196, 2
      %s199 = smul.u32 2, %s198
      %p200 = scmp.lt.s32.totalorder %s18, 1
      %s201 = scalar_select %p200, %s18, 1
      %p202 = scmp.lt.s32.totalorder %s195, 2
      %s203 = scalar_select %p202, %s195, 2
      %s204 = smul.addr %s201, 3
      %s205 = sadd.s32 %s203, %s204
      %s206 = smul.addr %s205, 2
      %s207 = scalar_lea.vmem %s0, %s206
      %p208 = pneg %p49
      %p209 = pneg %p46
      %s210 = sadd.s32 %s19, 1
      %s211 = smul.u32 %s210, 2
      %p212 = scmp.lt.s32.totalorder %s18, 1
      %s213 = scalar_select %p212, %s18, 1
      %p214 = scmp.lt.s32.totalorder %s211, 2
      %s215 = scalar_select %p214, %s211, 2
      %s216 = smul.addr %s213, 3
      %s217 = sadd.s32 %s215, %s216
      %s218 = smul.addr %s217, 2
      %s219 = scalar_lea.vmem %s1, %s218
      %p220 = pneg %p81
      %p221 = pneg %p78
      %p222 = pneg %p102
      %p223 = pneg %p99
      %p224 = pneg %p130
      %p225 = pneg %p127
      %s226 = smul.u32 2, %s19
      %p227 = scmp.lt.s32.totalorder %s18, 1
      %s228 = scalar_select %p227, %s18, 1
      %p229 = scmp.lt.s32.totalorder %s226, 1
      %s230 = scalar_select %p229, %s226, 1
      %s231 = smul.addr %s228, 2
      %s232 = sadd.s32 %s230, %s231
      %s233 = smul.addr %s232, 8
      %s234 = scalar_lea.vmem %s3, %s233
      %s235 = smul.u32 2, %s19
      %s236 = ssub.s32 3, %s235
      %p237 = scmp.lt.s32.totalorder %s236, 2
      %s238 = scalar_select %p237, %s236, 2
      %s239 = smul.u32 2, %s238
      %p240 = scmp.lt.s32.totalorder %s18, 1
      %s241 = scalar_select %p240, %s18, 1
      %p242 = scmp.lt.s32.totalorder %s235, 2
      %s243 = scalar_select %p242, %s235, 2
      %s244 = smul.addr %s241, 3
      %s245 = sadd.s32 %s243, %s244
      %s246 = smul.addr %s245, 2
      %s247 = scalar_lea.vmem %s0, %s246
      %s248 = smul.u32 2, %s19
      %s249 = ssub.s32 3, %s248
      %p250 = scmp.lt.s32.totalorder %s249, 2
      %s251 = scalar_select %p250, %s249, 2
      %s252 = smul.u32 2, %s251
      %s253 = sadd.s32 %s19, 1
      %s254 = smul.u32 %s253, 2
      %p255 = scmp.lt.s32.totalorder %s18, 1
      %s256 = scalar_select %p255, %s18, 1
      %p257 = scmp.lt.s32.totalorder %s254, 2
      %s258 = scalar_select %p257, %s254, 2
      %s259 = smul.addr %s256, 3
      %s260 = sadd.s32 %s258, %s259
      %s261 = smul.addr %s260, 2
      %s262 = scalar_lea.vmem %s1, %s261
      %s263 = sadd.s32 %s19, 1
      %s264 = smul.u32 %s263, 2
      %s265 = smul.u32 2, %s19
      %p266 = scmp.lt.s32.totalorder %s18, 1
      %s267 = scalar_select %p266, %s18, 1
      %p268 = scmp.lt.s32.totalorder %s265, 1
      %s269 = scalar_select %p268, %s265, 1
      %s270 = smul.addr %s267, 2
      %s271 = sadd.s32 %s269, %s270
      %s272 = smul.addr %s271, 8
      %s273 = scalar_lea.vmem %s3, %s272
      %s274 = smul.u32 2, %s19
      %v276 = vld [vmem:[%s247] sm:$0xf]
      %v277 = vld [vmem:[%s262] sm:$0x3]
      %279 = vst [vmem:[#allocation1] ss:$4 sm:$0xff] %v276
      %v280 = vld.sshfl [vmem:[#allocation1] sm:$0xff pattern:$0x73625140]
      %v282 = vld.sshfl [vmem:[#allocation1 + $0x8] sm:$0xff pattern:$0x73625140]
      %v285 = vrot.slane %v280, 6
      %v286 = vrot.slane %v282, 6
      %v287 = vrot.slane %v277, 6
      %288 = vrot.lane.b32.xlu0 %v285, 127
      %v289 = vpop.permute.xlu0 %288
      %290 = vrot.lane.b32.xlu0 %v286, 127
      %v291 = vpop.permute.xlu0 %290
      %292 = vrot.lane.b32.xlu0 %v287, 127
      %v293 = vpop.permute.xlu0 %292
      %vm294 = vcmask 1039360
      %v295 = vsel %vm294, %v289, %v291
      %v296 = vsel %vm294, %v291, %v293
      %v297 = vrot.slane %v280, 4
      %v298 = vrot.slane %v282, 4
      %v299 = vrot.slane %v277, 4
      %300 = vrot.lane.b32.xlu0 %v297, 126
      %v301 = vpop.permute.xlu0 %300
      %302 = vrot.lane.b32.xlu0 %v298, 126
      %v303 = vpop.permute.xlu0 %302
      %304 = vrot.lane.b32.xlu0 %v299, 126
      %v305 = vpop.permute.xlu0 %304
      %vm306 = vcmask 1031168
      %v307 = vsel %vm306, %v301, %v303
      %v308 = vsel %vm306, %v303, %v305
      %v309 = vrot.slane %v280, 2
      %v310 = vrot.slane %v282, 2
      %v311 = vrot.slane %v277, 2
      %312 = vrot.lane.b32.xlu0 %v309, 112
      %v313 = vpop.permute.xlu0 %312
      %314 = vrot.lane.b32.xlu0 %v310, 112
      %v315 = vpop.permute.xlu0 %314
      %316 = vrot.lane.b32.xlu0 %v311, 112
      %v317 = vpop.permute.xlu0 %316
      %vm318 = vcmask 916480
      %v319 = vsel %vm318, %v313, %v315
      %v320 = vsel %vm318, %v315, %v317
      %321 = vrot.lane.b32.xlu0 %v280, 111
      %v322 = vpop.permute.xlu0 %321
      %323 = vrot.lane.b32.xlu0 %v282, 111
      %v324 = vpop.permute.xlu0 %323
      %325 = vrot.lane.b32.xlu0 %v277, 111
      %v326 = vpop.permute.xlu0 %325
      %vm327 = vcmask 908288
      %v328 = vsel %vm327, %v322, %v324
      %v329 = vsel %vm327, %v324, %v326
      %330 = vrot.lane.b32.xlu0 %v285, 110
      %v331 = vpop.permute.xlu0 %330
      %332 = vrot.lane.b32.xlu0 %v286, 110
      %v333 = vpop.permute.xlu0 %332
      %334 = vrot.lane.b32.xlu0 %v287, 110
      %v335 = vpop.permute.xlu0 %334
      %vm336 = vcmask 900096
      %v337 = vsel %vm336, %v331, %v333
      %v338 = vsel %vm336, %v333, %v335
      %339 = vrot.lane.b32.xlu0 %v297, 96
      %v340 = vpop.permute.xlu0 %339
      %341 = vrot.lane.b32.xlu0 %v298, 96
      %v342 = vpop.permute.xlu0 %341
      %343 = vrot.lane.b32.xlu0 %v299, 96
      %v344 = vpop.permute.xlu0 %343
      %vm345 = vcmask 785408
      %v346 = vsel %vm345, %v340, %v342
      %v347 = vsel %vm345, %v342, %v344
      %348 = vrot.lane.b32.xlu0 %v309, 95
      %v349 = vpop.permute.xlu0 %348
      %350 = vrot.lane.b32.xlu0 %v310, 95
      %v351 = vpop.permute.xlu0 %350
      %352 = vrot.lane.b32.xlu0 %v311, 95
      %v353 = vpop.permute.xlu0 %352
      %vm354 = vcmask 777216
      %v355 = vsel %vm354, %v349, %v351
      %v356 = vsel %vm354, %v351, %v353
      %357 = vrot.lane.b32.xlu0 %v280, 94
      %v358 = vpop.permute.xlu0 %357
      %359 = vrot.lane.b32.xlu0 %v282, 94
      %v360 = vpop.permute.xlu0 %359
      %361 = vrot.lane.b32.xlu0 %v277, 94
      %v362 = vpop.permute.xlu0 %361
      %vm363 = vcmask 769024
      %v364 = vsel %vm363, %v358, %v360
      %v365 = vsel %vm363, %v360, %v362
      %vm366 = vcmask 1041408
      %v368 = vsel %vm366, %v280, %v295
      %v370 = vsel %vm366, %v282, %v296
      %vm371 = vcmask 1043456
      %v373 = vsel %vm371, %v368, %v307
      %v375 = vsel %vm371, %v370, %v308
      %vm376 = vcmask 1045504
      %v378 = vsel %vm376, %v373, %v319
      %v381 = vsel %vm376, %v375, %v320
      %v385 = vsel %vm366, %v328, %v337
      %v388 = vsel %vm366, %v329, %v338
      %v390 = vsel %vm371, %v385, %v346
      %v392 = vsel %vm371, %v388, %v347
      %v394 = vsel %vm376, %v390, %v355
      %v397 = vsel %vm376, %v392, %v356
      %v399 = vld [vmem:[%s2] sm:$0xf]
      %vm400 = vcmask 293888
      %v402 = vsel %vm400, %v399, 0
      %v405 = vsel %vm366, %v364, 0
      %v408 = vsel %vm366, %v365, 0
      %410 = vmatpush.bf16.msra.mxu0 0
      %411 = vmatpush.bf16.msra.mxu0 0
      %412 = vmatpush.bf16.msra.mxu0 0
      %413 = vmatpush.bf16.msra.mxu0 0
      %414 = vmatpush.bf16.msra.mxu0 0
      %415 = vmatpush.bf16.msra.mxu0 %v405
      %416 = vmatpush.bf16.msra.mxu0 %v394
      %417 = vmatpush.bf16.msra.mxu0 %v378
      %418 = vmatmul.bf16.gmra.mxu0 %v402
      %v419 = vpop.f32.mrf.mxu0
      %v420 = vadd.f32 0.0, %v419
      %v421 = vpop.f32.mrf.mxu0
      %422 = vdwg.mxu0
      %423 = vmatpush.bf16.msra.mxu0 0
      %424 = vmatpush.bf16.msra.mxu0 0
      %425 = vmatpush.bf16.msra.mxu0 0
      %426 = vmatpush.bf16.msra.mxu0 0
      %427 = vmatpush.bf16.msra.mxu0 0
      %428 = vmatpush.bf16.msra.mxu0 %v408
      %429 = vmatpush.bf16.msra.mxu0 %v397
      %430 = vmatpush.bf16.msra.mxu0 %v381
      %431 = vmatmul.bf16.gmra.mxu0 %v402
      %v432 = vpop.f32.mrf.mxu0
      %v433 = vadd.f32 0.0, %v432
      %v434 = vpop.f32.mrf.mxu0
      %435 = vdwg.mxu0
      %436 = vst [vmem:[%s273] sm:$0xff] %v420
      %437 = vst [vmem:[%s273 + $0x8] sm:$0xff] %v433
      %s438 = smul.u32 2, %s19
      %p439 = scmp.lt.s32.totalorder %s18, 1
      %s440 = scalar_select %p439, %s18, 1
      %p441 = scmp.lt.s32.totalorder %s438, 1
      %s442 = scalar_select %p441, %s438, 1
      %s443 = smul.addr %s440, 2
      %s444 = sadd.s32 %s442, %s443
      %s445 = smul.addr %s444, 8
      %s446 = scalar_lea.vmem %s3, %s445
      // Predicated region
      $region33: #{gabor_conv2d_forward.3} parent=31 // pred_check
        %p447 = pneg %p127
      $region34: #{gabor_conv2d_forward.3} parent=31 // pred_check_branch
        %449 = sbr.rel (%p447) target = $region36
      $region35: #{gabor_conv2d_forward.3} parent=31 // pred_region
        %s450 = smul.u32 2, %s19
      $region36: #{gabor_conv2d_forward.3} parent=31 // pred_fallthru
        _
    $region32: #{gabor_conv2d_forward.3} parent=5 // pred_fallthru
      _
    %p451 = scmp.le.s32.totalorder 2, %s9
    // Predicated region
    $region37: #{gabor_conv2d_forward.3} parent=5 // pred_check
      %p452 = pneg %p451
    $region38: #{gabor_conv2d_forward.3} parent=5 // pred_check_branch
      %454 = sbr.rel (%p452) target = $region40
    $region39: #{gabor_conv2d_forward.3} parent=5 // pred_region
      %s455 = ssub.s32 %s9, 2
      // Predicated region
      $region41: #{gabor_conv2d_forward.3} parent=39 // pred_check
        %p456 = pneg %p133
      $region42: #{gabor_conv2d_forward.3} parent=39 // pred_check_branch
        %458 = sbr.rel (%p456) target = $region44
      $region43: #{gabor_conv2d_forward.3} parent=39 // pred_region
        %s459 = smul.u32 2, %s21
        %p460 = scmp.lt.s32.totalorder %s20, 1
        %s461 = scalar_select %p460, %s20, 1
        %p462 = scmp.lt.s32.totalorder %s459, 1
        %s463 = scalar_select %p462, %s459, 1
        %s464 = smul.addr %s461, 2
        %s465 = sadd.s32 %s463, %s464
        %s466 = smul.addr %s465, 8
        %s467 = scalar_lea.vmem %s3, %s466
      $region44: #{gabor_conv2d_forward.3} parent=39 // pred_fallthru
        _
    $region40: #{gabor_conv2d_forward.3} parent=5 // pred_fallthru
      _
  $region6: #{gabor_conv2d_forward.3} parent=0 // loop_footer
    %s13 = sadd.s32 1, %s9
  $region7: #{gabor_conv2d_forward.3} parent=0 // loop_footer_branch
    %8 = sbr.rel target = $region3
  $region8: #{gabor_conv2d_forward.3} parent=0 // loop_exit
    _

</llo_original>
